<compile_context>
chip_gen: v5e
topology: v5e:2x2
jax: 0.10.0
libtpu: 0.0.40
codegen_flags: <defaults>
</compile_context>

<pallas_src>
import jax
import jax.numpy as jnp
from jax.experimental import pallas as pl
from jax.experimental.pallas import tpu as pltpu


def _h_sigmoid_kernel(x_ref, o_ref):
    x = x_ref[...]
    # relu6(x + 3) / 6  (compute stays in the input dtype, matching torch)
    y = jnp.minimum(jnp.maximum(x + 3.0, 0.0), 6.0) / 6.0
    o_ref[...] = y.astype(o_ref.dtype)


# Minimum sublane multiple per itemsize (f32 -> 8, bf16 -> 16, int8/fp8 -> 32).
_SUBLANES = {4: 8, 2: 16, 1: 32}


def _pick_lanes(n):
    # Widest lane count that divides n (n is already a multiple of 128).
    for lanes in (1024, 512, 256, 128):
        if n % lanes == 0:
            return lanes
    return 128


def _vmem_budget():
    """Generation-aware (block_bytes, vmem_limit_bytes).

    128-MiB-VMEM parts (v5e/v6e): 8 MiB blocks, 48 MiB scoped limit.
    64-MiB-VMEM parts (v7x) / unknown: 4 MiB blocks, 32 MiB limit.
    """
    cap = None
    try:
        cap = getattr(pltpu.get_tpu_info(), "vmem_capacity_bytes", None)
    except Exception:
        cap = None
    if cap is not None and cap >= (128 << 20):
        return 8 << 20, 48 << 20
    return 4 << 20, 32 << 20


def _h_sigmoid_2d(x2d, block_bytes, vmem_limit):
    rows, lanes = x2d.shape
    itemsize = jnp.dtype(x2d.dtype).itemsize
    sub = _SUBLANES.get(itemsize, 8)

    # Target ~block_bytes per block, rounded down to a sublane multiple.
    tile_rows = max(block_bytes // (lanes * itemsize), sub)
    tile_rows = max((tile_rows // sub) * sub, sub)

    if tile_rows >= rows:
        if rows >= 2 * sub:
            # Keep >= 2 grid steps so both v7x TensorCores stream data.
            tile_rows = pl.cdiv(pl.cdiv(rows, 2), sub) * sub
        else:
            # Too few rows to split at sublane granularity: single full block
            # (block dim == full array dim, always layout-legal).
            tile_rows = rows

    grid_n = pl.cdiv(rows, tile_rows)

    # Prefer an even grid-step count (balanced work across 2 TCs on v7x).
    if grid_n > 1 and grid_n % 2 == 1 and tile_rows > sub:
        cand = pl.cdiv(pl.cdiv(rows, grid_n + 1), sub) * sub
        if cand >= sub:
            tile_rows = cand
            grid_n = pl.cdiv(rows, tile_rows)

    total = rows * lanes
    return pl.pallas_call(
        _h_sigmoid_kernel,
        out_shape=jax.ShapeDtypeStruct((rows, lanes), x2d.dtype),
        grid_spec=pltpu.PrefetchScalarGridSpec(
            num_scalar_prefetch=0,
            grid=(grid_n,),
            in_specs=[pl.BlockSpec((tile_rows, lanes), lambda i: (i, 0))],
            out_specs=pl.BlockSpec((tile_rows, lanes), lambda i: (i, 0)),
        ),
        compiler_params=pltpu.CompilerParams(
            dimension_semantics=("parallel",),
            vmem_limit_bytes=vmem_limit,
        ),
        cost_estimate=pl.CostEstimate(
            flops=4 * total,
            transcendentals=0,
            bytes_accessed=2 * total * itemsize,
        ),
    )(x2d)


def h_sigmoid(x):
    """Elementwise hard-sigmoid, matches torch relu6(x+3)/6 semantics."""
    orig_shape = x.shape
    dtype = x.dtype
    total = x.size
    if total == 0:
        return x

    block_bytes, vmem_limit = _vmem_budget()

    x_flat = jnp.ravel(x)
    rem = total % 128
    aligned = total - rem

    if aligned == 0:
        # Tiny tensor (< 128 elements): not worth a kernel launch.
        y = jnp.minimum(jnp.maximum(x_flat + 3.0, 0.0), 6.0) / 6.0
        return y.astype(dtype).reshape(orig_shape)

    lanes = _pick_lanes(aligned)
    prefix = x_flat[:aligned] if rem else x_flat
    x2d = prefix.reshape(aligned // lanes, lanes)
    out_flat = _h_sigmoid_2d(x2d, block_bytes, vmem_limit).reshape(-1)

    if rem:
        # Handle the <128-element tail in plain jnp (no full-array pad/slice).
        tail = x_flat[aligned:]
        tail_out = (jnp.minimum(jnp.maximum(tail + 3.0, 0.0), 6.0) / 6.0).astype(dtype)
        out_flat = jnp.concatenate([out_flat, tail_out])

    return out_flat.reshape(orig_shape)


if __name__ == "__main__":
    key = jax.random.PRNGKey(0)

    # Small NCHW input consistent with the module's usage (aligned fast path).
    x = jax.random.normal(key, (2, 4, 16, 16), dtype=jnp.float32) * 4.0
    y = jax.block_until_ready(h_sigmoid(x))
    y_ref = jnp.clip(x + 3.0, 0.0, 6.0) / 6.0
    assert y.shape == x.shape and y.dtype == x.dtype
    assert jnp.allclose(y, y_ref, atol=1e-6), "mismatch vs reference (f32 fast path)"

    # Larger-but-still-small input that exercises the multi-block (grid >= 2) path.
    xg = jax.random.normal(jax.random.PRNGKey(3), (4, 8, 16, 32), dtype=jnp.float32) * 4.0
    yg = jax.block_until_ready(h_sigmoid(xg))
    yg_ref = jnp.clip(xg + 3.0, 0.0, 6.0) / 6.0
    assert yg.shape == xg.shape and yg.dtype == xg.dtype
    assert jnp.allclose(yg, yg_ref, atol=1e-6), "mismatch vs reference (multi-block)"

    # Tiny odd-sized input (< 128 elements): pure-jnp fallback.
    x2 = jax.random.normal(jax.random.PRNGKey(1), (3, 5, 7), dtype=jnp.float32) * 4.0
    y2 = jax.block_until_ready(h_sigmoid(x2))
    y2_ref = jnp.clip(x2 + 3.0, 0.0, 6.0) / 6.0
    assert y2.shape == x2.shape and y2.dtype == x2.dtype
    assert jnp.allclose(y2, y2_ref, atol=1e-6), "mismatch vs reference (tiny path)"

    # Ragged input (> 128, not a multiple of 128): kernel prefix + jnp tail.
    x3 = jax.random.normal(jax.random.PRNGKey(4), (3, 7, 13), dtype=jnp.float32) * 4.0
    y3 = jax.block_until_ready(h_sigmoid(x3))
    y3_ref = jnp.clip(x3 + 3.0, 0.0, 6.0) / 6.0
    assert y3.shape == x3.shape and y3.dtype == x3.dtype
    assert jnp.allclose(y3, y3_ref, atol=1e-6), "mismatch vs reference (ragged path)"

    # bf16 input.
    xb = (jax.random.normal(jax.random.PRNGKey(2), (2, 4, 16, 16)) * 4.0).astype(jnp.bfloat16)
    yb = jax.block_until_ready(h_sigmoid(xb))
    yb_ref = (jnp.clip(xb.astype(jnp.float32) + 3.0, 0.0, 6.0) / 6.0).astype(jnp.bfloat16)
    assert yb.shape == xb.shape and yb.dtype == xb.dtype
    assert jnp.allclose(yb.astype(jnp.float32), yb_ref.astype(jnp.float32), atol=1e-2), \
        "mismatch vs reference (bf16)"

    print("KERNEL_OK")
</pallas_src>

<mosaic_0001>
module attributes {stable_mosaic.version = 11 : i64} {
  func.func @_h_sigmoid_kernel(%arg0: i32, %arg1: memref<2x1024xf32, #tpu.memory_space<vmem>>, %arg2: memref<2x1024xf32, #tpu.memory_space<vmem>>) attributes {dimension_semantics = [#tpu.dimension_semantics<parallel>], iteration_bounds = array<i64: 1>, scalar_prefetch = 0 : i64, scratch_operands = 0 : i64, tpu.core_type = #tpu.core_type<tc>, window_params = [{transform_indices = @transform_0, window_bounds = array<i64: 2, 1024>}, {transform_indices = @transform_1, window_bounds = array<i64: 2, 1024>}]} {
    %c0 = arith.constant 0 : index
    %c0_0 = arith.constant 0 : index
    %0 = vector.load %arg1[%c0, %c0_0] : memref<2x1024xf32, #tpu.memory_space<vmem>>, vector<2x1024xf32>
    %cst = arith.constant 3.000000e+00 : f32
    %1 = vector.broadcast %cst : f32 to vector<2x1024xf32>
    %2 = arith.addf %0, %1 : vector<2x1024xf32>
    %cst_1 = arith.constant 0.000000e+00 : f32
    %3 = vector.broadcast %cst_1 : f32 to vector<2x1024xf32>
    %4 = arith.maximumf %2, %3 : vector<2x1024xf32>
    %cst_2 = arith.constant 6.000000e+00 : f32
    %5 = vector.broadcast %cst_2 : f32 to vector<2x1024xf32>
    %6 = arith.minimumf %4, %5 : vector<2x1024xf32>
    %cst_3 = arith.constant 6.000000e+00 : f32
    %7 = vector.broadcast %cst_3 : f32 to vector<2x1024xf32>
    %8 = arith.divf %6, %7 : vector<2x1024xf32>
    %c0_4 = arith.constant 0 : index
    %c0_5 = arith.constant 0 : index
    %9 = vector.load %arg2[%c0_4, %c0_5] : memref<2x1024xf32, #tpu.memory_space<vmem>>, vector<2x1024xf32>
    tpu.vector_store %arg2[%c0_4, %c0_5], %8 {strides = array<i32>} : memref<2x1024xf32, #tpu.memory_space<vmem>>, vector<2x1024xf32>,
    return
  }
  func.func @transform_0(%arg0: i32) -> (i32, i32) {
    %c0_i32 = arith.constant 0 : i32
    %c0_i32_0 = arith.constant 0 : i32
    return %arg0, %c0_i32 : i32, i32
  }
  func.func @transform_1(%arg0: i32) -> (i32, i32) {
    %c0_i32 = arith.constant 0 : i32
    %c0_i32_0 = arith.constant 0 : i32
    return %arg0, %c0_i32 : i32, i32
  }
}

</mosaic_0001>

<llo_original>
// kernel: tpu_custom_call.1
$region0: #{tpu_custom_call.1}
  #allocation0 [shape = 'u32[]', space=smem, size = 0x4, offset = 0x4, fixed_abs, tag = 'smem constant byte address 0x4 - core index']
  #allocation1 [shape = 'u32[72,128]{1,0:T(1,128)}', space=vmem, size = 0x9000, scoped, tag = 'internal scratch']
  %s0 = inlined_call_operand.hbm [shape: f32[2,1024], index: 0, kind: input, shape index: {}]
  %s1 = inlined_call_operand.hbm [shape: f32[2,1024], index: 1, kind: output, shape index: {}]
  %s2 = sld [smem:[#allocation0]]
  $region18: #{tpu_custom_call.1} parent=0
    _
  %s4 = ssub.s32 1, %s2
  %s5 = scalar_select 0, %s4, %s2
  $region1: #{tpu_custom_call.1} parent=0
    #allocation2 [shape = 'u8[8192]{0}', space=vmem, size = 0x2000, scoped, tag = 'input window, operand 0, single buffered']
    #allocation3 [shape = 's32[1]{0}', space=sflag, size = 0x4, scoped, tag = 'scoped memory for tpu_custom_call.1']
    #allocation4 [shape = 's32[1]{0}', space=sflag, size = 0x4, scoped, tag = 'scoped memory for tpu_custom_call.1']
    #allocation5 [shape = 'u8[8192]{0}', space=vmem, size = 0x2000, scoped, tag = 'output window, operand 0, single buffered']
    %6 = vsyncpa [#allocation3], 0
    %7 = vsyncpa [#allocation4], 0
    // Predicated region
    $region2: #{tpu_custom_call.1} parent=1 // pred_check
      _
    $region3: #{tpu_custom_call.1} parent=1 // pred_check_branch
      %9 = sbr.rel (0) target = $region5
    $region4: #{tpu_custom_call.1} parent=1 // pred_region
      %11 = vsyncadd [#allocation3], 0
      %s13 = sshll.u32 %s0, 4
      %s14 = int_to_ptr.hbm [resolvable:$true] %s13
      %s15 = sshll.u32 [#allocation2], 4
      %s16 = int_to_ptr.vmem [resolvable:$true] %s15
      %18 = dma.hbm_to_vmem [thread:$0]  %s14, 256, %s16, [#allocation3]
    $region5: #{tpu_custom_call.1} parent=1 // pred_fallthru
      _
    // Predicated region
    $region6: #{tpu_custom_call.1} parent=1 // pred_check
      _
    $region7: #{tpu_custom_call.1} parent=1 // pred_check_branch
      %20 = sbr.rel (0) target = $region9
    $region8: #{tpu_custom_call.1} parent=1 // pred_region
      %22 = dma.done [#allocation3], 256
    $region9: #{tpu_custom_call.1} parent=1 // pred_fallthru
      _
    %v23 = vld [vmem:[#allocation2] sm:$0xff]
    %v24 = vld [vmem:[#allocation2 + $0x8] sm:$0xff]
    %v25 = vadd.f32 %v23, 3.0
    %v26 = vadd.f32 %v24, 3.0
    %v27 = vmax.f32 %v25, 0.0
    %v28 = vmax.f32 %v26, 0.0
    %v29 = vmin.f32 %v27, 6.0
    %v30 = vmin.f32 %v28, 6.0
    %v31 = vrcp.pop 6.0
    %v32 = vmul.f32 6.0, %v31
    %v33 = vsub.f32 1.0, %v32
    %v34 = vmul.f32 %v31, %v33
    %v35 = vadd.f32 %v31, %v34
    %vm36 = vweird.f32 %v31
    %v37 = vsel %vm36, %v31, %v35
    %v38 = vmul.f32 %v29, %v37
    %v39 = vmul.f32 %v30, %v37
    %40 = vst [vmem:[#allocation5] sm:$0xff] %v38
    %41 = vst [vmem:[#allocation5 + $0x8] sm:$0xff] %v39
    // Predicated region
    $region10: #{tpu_custom_call.1} parent=1 // pred_check
      _
    $region11: #{tpu_custom_call.1} parent=1 // pred_check_branch
      %43 = sbr.rel (0) target = $region13
    $region12: #{tpu_custom_call.1} parent=1 // pred_region
      %45 = vsyncadd [#allocation4], 0
      %s47 = sshll.u32 [#allocation5], 4
      %s48 = int_to_ptr.vmem [resolvable:$true] %s47
      %s49 = sshll.u32 %s1, 4
      %s50 = int_to_ptr.hbm [resolvable:$true] %s49
      %52 = dma.vmem_to_hbm [thread:$0]  %s48, 256, %s50, [#allocation4]
    $region13: #{tpu_custom_call.1} parent=1 // pred_fallthru
      _
    // Predicated region
    $region14: #{tpu_custom_call.1} parent=1 // pred_check
      _
    $region15: #{tpu_custom_call.1} parent=1 // pred_check_branch
      %54 = sbr.rel (0) target = $region17
    $region16: #{tpu_custom_call.1} parent=1 // pred_region
      %56 = dma.done [#allocation4], 256
    $region17: #{tpu_custom_call.1} parent=1 // pred_fallthru
      _
    %57 = vsyncpa [#allocation3], 1
    %58 = vsyncpa [#allocation4], 1

</llo_original>
